<compile_context>
chip_gen: v7x
topology: tpu7x:2x2x1
jax: 0.10.0
libtpu: 0.0.40
codegen_flags: <defaults>
</compile_context>

<pallas_src>
import jax
import jax.numpy as jnp
from jax.experimental import pallas as pl
from jax.experimental.pallas import tpu as pltpu

LANE = 128


def _round_up(x, m):
    return ((x + m - 1) // m) * m


def _cdiv(a, b):
    return -(-a // b)


def titanic_kernel(xT_ref, w0_ref, b0_ref, w1_ref, b1_ref, w2_ref, b2_ref, oT_ref):
    # x tile streamed as bf16 (or f32); all arithmetic in f32.
    xT = xT_ref[...].astype(jnp.float32)                          # (F, TB)

    # fc0 + relu : (10, F) @ (F, TB) -> (10, TB)
    h0 = jnp.dot(w0_ref[...], xT, preferred_element_type=jnp.float32) + b0_ref[...]
    h0 = jnp.maximum(h0, 0.0)

    # dropout p=0.3 -> identity (eval mode)

    # fc1 + relu : (5, 10) @ (10, TB) -> (5, TB)
    h1 = jnp.dot(w1_ref[...], h0, preferred_element_type=jnp.float32) + b1_ref[...]
    h1 = jnp.maximum(h1, 0.0)

    # fc2 + relu : (2, 5) @ (5, TB) -> (2, TB)
    h2 = jnp.dot(w2_ref[...], h1, preferred_element_type=jnp.float32) + b2_ref[...]
    h2 = jnp.maximum(h2, 0.0)

    # 2-class log_softmax over the class (sublane) axis, on the whole (2, TB)
    # block: full-width exp, no concatenate, one lane-dense store.
    m = jnp.max(h2, axis=0, keepdims=True)                        # (1, TB)
    z = h2 - m
    lse = jnp.log(jnp.sum(jnp.exp(z), axis=0, keepdims=True))     # (1, TB)
    oT_ref[...] = z - lse                                         # (2, TB)


def titanic_net_featmajor(xT, params, *, tile_cap=32768, stream_dtype=jnp.bfloat16):
    """Feature-major forward.

    xT:     (F, B) activations, feature-major (batch on the lane axis).
    params: PyTorch-convention (out, in) weights and (out, 1) biases, f32.
    Returns (2, B) log-probabilities, class-major.
    """
    w0, b0, w1, b1, w2, b2 = params
    F, B = xT.shape

    # --- batch tiling --------------------------------------------------------
    # Pad only to a lane multiple, then size the tile as ~ceil(B128 / n_tiles)
    # so the extra per-tile pad is <128 columns.  Keep >=2 tiles whenever
    # B >= 256 so the "parallel" batch axis can use both v7x TensorCores.
    B128 = _round_up(B, LANE)
    n_tiles = max(_cdiv(B128, tile_cap), 2 if B128 >= 2 * LANE else 1)
    TB = _round_up(_cdiv(B128, n_tiles), LANE)
    n_tiles = _cdiv(B128, TB)
    B_pad = n_tiles * TB

    xTs = xT.astype(stream_dtype)
    if B_pad != B:
        xTs = jnp.pad(xTs, ((0, 0), (0, B_pad - B)))

    x_spec = pl.BlockSpec((F, TB), lambda i: (0, i))
    o_spec = pl.BlockSpec((2, TB), lambda i: (0, i))
    # Whole-array, constant-index blocks: weights/biases stay resident in VMEM
    # across grid steps while x/out tiles are software-pipelined.
    w_spec = lambda a: pl.BlockSpec(a.shape, lambda i: (0, 0))

    x_bytes = jnp.dtype(stream_dtype).itemsize
    cost = pl.CostEstimate(
        flops=2 * B_pad * (F * 10 + 10 * 5 + 5 * 2),
        transcendentals=3 * B_pad,                       # exp on (2,TB) + log on (1,TB)
        bytes_accessed=B_pad * (F * x_bytes + 2 * 4)
        + sum(int(a.size) * 4 for a in (w0, b0, w1, b1, w2, b2)),
    )

    oT = pl.pallas_call(
        titanic_kernel,
        out_shape=jax.ShapeDtypeStruct((2, B_pad), jnp.float32),
        grid=(n_tiles,),
        in_specs=[x_spec,
                  w_spec(w0), w_spec(b0),
                  w_spec(w1), w_spec(b1),
                  w_spec(w2), w_spec(b2)],
        out_specs=o_spec,
        compiler_params=pltpu.CompilerParams(
            dimension_semantics=("parallel",),           # uses both TCs on v7x
            # ~200 B/column live VMEM (double-buffered x/out + f32
            # intermediates) -> ~6.5 MiB at TB=32768; 32 MiB fits every gen.
            vmem_limit_bytes=32 * 1024 * 1024,
        ),
        cost_estimate=cost,
    )(xTs, w0, b0, w1, b1, w2, b2)

    return oT[:, :B]


def titanic_net(x, params, **kwargs):
    """Batch-major convenience wrapper: x (B, F) -> (B, 2) log-probs.

    Costs one extra HBM pass for the transpose; prefer producing feature-major
    activations upstream and calling `titanic_net_featmajor` directly.
    """
    return titanic_net_featmajor(x.T, params, **kwargs).T


def init_params(key, input_len):
    """PyTorch-Linear-style uniform init. Weights (out, in), biases (out, 1)."""
    def linear(k, fan_in, fan_out):
        kw, kb = jax.random.split(k)
        bound = 1.0 / jnp.sqrt(float(fan_in))
        w = jax.random.uniform(kw, (fan_out, fan_in), jnp.float32, -bound, bound)
        b = jax.random.uniform(kb, (fan_out, 1), jnp.float32, -bound, bound)
        return w, b

    k0, k1, k2 = jax.random.split(key, 3)
    w0, b0 = linear(k0, input_len, 10)
    w1, b1 = linear(k1, 10, 5)
    w2, b2 = linear(k2, 5, 2)
    return (w0, b0, w1, b1, w2, b2)


if __name__ == "__main__":
    key = jax.random.PRNGKey(0)
    k_x, k_p = jax.random.split(key)

    batch, input_len = 8, 8          # small Titanic-like feature vector
    x = jax.random.normal(k_x, (batch, input_len), dtype=jnp.float32)
    params = init_params(k_p, input_len)
    w0, b0, w1, b1, w2, b2 = params

    def ref_forward(xr):
        h = jnp.maximum(xr @ w0.T + b0.T, 0.0)
        h = jnp.maximum(h @ w1.T + b1.T, 0.0)
        h = jnp.maximum(h @ w2.T + b2.T, 0.0)
        return jax.nn.log_softmax(h, axis=1)

    # 1) f32 streaming: tight correctness check vs pure-JAX reference.
    out32 = titanic_net(x, params, stream_dtype=jnp.float32)
    jax.block_until_ready(out32)
    assert out32.shape == (batch, 2)
    assert jnp.allclose(out32, ref_forward(x), atol=1e-5), "f32 mismatch vs reference"

    # 2) Default bf16 x-streaming: reference fed the same bf16-rounded inputs
    #    (all matmuls are f32 in both paths).
    out16 = titanic_net(x, params)
    jax.block_until_ready(out16)
    x_bf = x.astype(jnp.bfloat16).astype(jnp.float32)
    assert jnp.allclose(out16, ref_forward(x_bf), atol=1e-4), "bf16 mismatch vs reference"

    # 3) Multi-tile path: grid of 2 "parallel" tiles (v7x 2-TC case) with a
    #    small (<~128/tile) batch pad.
    batch2 = 300
    x2 = jax.random.normal(jax.random.PRNGKey(1), (batch2, input_len), jnp.float32)
    out2 = titanic_net(x2, params)
    jax.block_until_ready(out2)
    x2_bf = x2.astype(jnp.bfloat16).astype(jnp.float32)
    assert out2.shape == (batch2, 2)
    assert jnp.allclose(out2, ref_forward(x2_bf), atol=1e-4), "multi-tile mismatch"

    print("KERNEL_OK")
</pallas_src>

<mosaic_0001>
module attributes {stable_mosaic.version = 11 : i64} {
  func.func @titanic_kernel(%arg0: i32, %arg1: memref<8x128xf32, #tpu.memory_space<vmem>>, %arg2: memref<10x8xf32, #tpu.memory_space<vmem>>, %arg3: memref<10x1xf32, #tpu.memory_space<vmem>>, %arg4: memref<5x10xf32, #tpu.memory_space<vmem>>, %arg5: memref<5x1xf32, #tpu.memory_space<vmem>>, %arg6: memref<2x5xf32, #tpu.memory_space<vmem>>, %arg7: memref<2x1xf32, #tpu.memory_space<vmem>>, %arg8: memref<2x128xf32, #tpu.memory_space<vmem>>) attributes {dimension_semantics = [#tpu.dimension_semantics<parallel>], iteration_bounds = array<i64: 1>, scalar_prefetch = 0 : i64, scratch_operands = 0 : i64, tpu.core_type = #tpu.core_type<tc>, window_params = [{transform_indices = @transform_0, window_bounds = array<i64: 8, 128>}, {pipeline_mode = #tpu.pipeline_mode<synchronous>, transform_indices = @transform_1, window_bounds = array<i64: 10, 8>}, {pipeline_mode = #tpu.pipeline_mode<synchronous>, transform_indices = @transform_2, window_bounds = array<i64: 10, 1>}, {pipeline_mode = #tpu.pipeline_mode<synchronous>, transform_indices = @transform_3, window_bounds = array<i64: 5, 10>}, {pipeline_mode = #tpu.pipeline_mode<synchronous>, transform_indices = @transform_4, window_bounds = array<i64: 5, 1>}, {pipeline_mode = #tpu.pipeline_mode<synchronous>, transform_indices = @transform_5, window_bounds = array<i64: 2, 5>}, {pipeline_mode = #tpu.pipeline_mode<synchronous>, transform_indices = @transform_6, window_bounds = array<i64: 2, 1>}, {transform_indices = @transform_7, window_bounds = array<i64: 2, 128>}]} {
    %c0 = arith.constant 0 : index
    %c0_0 = arith.constant 0 : index
    %0 = vector.load %arg1[%c0, %c0_0] : memref<8x128xf32, #tpu.memory_space<vmem>>, vector<8x128xf32>
    %c0_1 = arith.constant 0 : index
    %c0_2 = arith.constant 0 : index
    %1 = vector.load %arg2[%c0_1, %c0_2] : memref<10x8xf32, #tpu.memory_space<vmem>>, vector<10x8xf32>
    %cst = arith.constant dense<0.000000e+00> : vector<10x128xf32>
    %2 = tpu.matmul %1, %0, %cst {dimension_numbers = #tpu.dot_dimension_numbers<[1], [0], [0], [1], [0, 0, 1, 1], [], []>} : vector<10x8xf32>, vector<8x128xf32>, vector<10x128xf32> -> vector<10x128xf32>
    %c0_3 = arith.constant 0 : index
    %c0_4 = arith.constant 0 : index
    %3 = vector.load %arg3[%c0_3, %c0_4] : memref<10x1xf32, #tpu.memory_space<vmem>>, vector<10x1xf32>
    %4 = vector.broadcast %3 : vector<10x1xf32> to vector<10x128xf32>
    %5 = arith.addf %2, %4 : vector<10x128xf32>
    %cst_5 = arith.constant 0.000000e+00 : f32
    %6 = vector.broadcast %cst_5 : f32 to vector<10x128xf32>
    %7 = arith.maximumf %5, %6 : vector<10x128xf32>
    %c0_6 = arith.constant 0 : index
    %c0_7 = arith.constant 0 : index
    %8 = vector.load %arg4[%c0_6, %c0_7] : memref<5x10xf32, #tpu.memory_space<vmem>>, vector<5x10xf32>
    %cst_8 = arith.constant dense<0.000000e+00> : vector<5x128xf32>
    %9 = tpu.matmul %8, %7, %cst_8 {dimension_numbers = #tpu.dot_dimension_numbers<[1], [0], [0], [1], [0, 0, 1, 1], [], []>} : vector<5x10xf32>, vector<10x128xf32>, vector<5x128xf32> -> vector<5x128xf32>
    %c0_9 = arith.constant 0 : index
    %c0_10 = arith.constant 0 : index
    %10 = vector.load %arg5[%c0_9, %c0_10] : memref<5x1xf32, #tpu.memory_space<vmem>>, vector<5x1xf32>
    %11 = vector.broadcast %10 : vector<5x1xf32> to vector<5x128xf32>
    %12 = arith.addf %9, %11 : vector<5x128xf32>
    %cst_11 = arith.constant 0.000000e+00 : f32
    %13 = vector.broadcast %cst_11 : f32 to vector<5x128xf32>
    %14 = arith.maximumf %12, %13 : vector<5x128xf32>
    %c0_12 = arith.constant 0 : index
    %c0_13 = arith.constant 0 : index
    %15 = vector.load %arg6[%c0_12, %c0_13] : memref<2x5xf32, #tpu.memory_space<vmem>>, vector<2x5xf32>
    %cst_14 = arith.constant dense<0.000000e+00> : vector<2x128xf32>
    %16 = tpu.matmul %15, %14, %cst_14 {dimension_numbers = #tpu.dot_dimension_numbers<[1], [0], [0], [1], [0, 0, 1, 1], [], []>} : vector<2x5xf32>, vector<5x128xf32>, vector<2x128xf32> -> vector<2x128xf32>
    %c0_15 = arith.constant 0 : index
    %c0_16 = arith.constant 0 : index
    %17 = vector.load %arg7[%c0_15, %c0_16] : memref<2x1xf32, #tpu.memory_space<vmem>>, vector<2x1xf32>
    %18 = vector.broadcast %17 : vector<2x1xf32> to vector<2x128xf32>
    %19 = arith.addf %16, %18 : vector<2x128xf32>
    %cst_17 = arith.constant 0.000000e+00 : f32
    %20 = vector.broadcast %cst_17 : f32 to vector<2x128xf32>
    %21 = arith.maximumf %19, %20 : vector<2x128xf32>
    %cst_18 = arith.constant dense<0xFF800000> : vector<128xf32>
    %22 = vector.multi_reduction <maximumf>, %21, %cst_18 [0] : vector<2x128xf32> to vector<128xf32>
    %23 = vector.shape_cast %22 : vector<128xf32> to vector<1x128xf32>
    %24 = vector.broadcast %23 : vector<1x128xf32> to vector<2x128xf32>
    %25 = arith.subf %21, %24 : vector<2x128xf32>
    %26 = math.exp %25 : vector<2x128xf32>
    %cst_19 = arith.constant dense<0.000000e+00> : vector<128xf32>
    %27 = vector.multi_reduction <add>, %26, %cst_19 [0] : vector<2x128xf32> to vector<128xf32>
    %28 = vector.shape_cast %27 : vector<128xf32> to vector<1x128xf32>
    %29 = math.log %28 : vector<1x128xf32>
    %30 = vector.broadcast %29 : vector<1x128xf32> to vector<2x128xf32>
    %31 = arith.subf %25, %30 : vector<2x128xf32>
    %c0_20 = arith.constant 0 : index
    %c0_21 = arith.constant 0 : index
    %32 = vector.load %arg8[%c0_20, %c0_21] : memref<2x128xf32, #tpu.memory_space<vmem>>, vector<2x128xf32>
    tpu.vector_store %arg8[%c0_20, %c0_21], %31 {strides = array<i32>} : memref<2x128xf32, #tpu.memory_space<vmem>>, vector<2x128xf32>,
    return
  }
  func.func @transform_0(%arg0: i32) -> (i32, i32) {
    %c0_i32 = arith.constant 0 : i32
    %c0_i32_0 = arith.constant 0 : i32
    return %c0_i32, %arg0 : i32, i32
  }
  func.func @transform_1(%arg0: i32) -> (i32, i32) {
    %c0_i32 = arith.constant 0 : i32
    %c0_i32_0 = arith.constant 0 : i32
    %c0_i32_1 = arith.constant 0 : i32
    return %c0_i32, %c0_i32_0 : i32, i32
  }
  func.func @transform_2(%arg0: i32) -> (i32, i32) {
    %c0_i32 = arith.constant 0 : i32
    %c0_i32_0 = arith.constant 0 : i32
    %c0_i32_1 = arith.constant 0 : i32
    return %c0_i32, %c0_i32_0 : i32, i32
  }
  func.func @transform_3(%arg0: i32) -> (i32, i32) {
    %c0_i32 = arith.constant 0 : i32
    %c0_i32_0 = arith.constant 0 : i32
    %c0_i32_1 = arith.constant 0 : i32
    return %c0_i32, %c0_i32_0 : i32, i32
  }
  func.func @transform_4(%arg0: i32) -> (i32, i32) {
    %c0_i32 = arith.constant 0 : i32
    %c0_i32_0 = arith.constant 0 : i32
    %c0_i32_1 = arith.constant 0 : i32
    return %c0_i32, %c0_i32_0 : i32, i32
  }
  func.func @transform_5(%arg0: i32) -> (i32, i32) {
    %c0_i32 = arith.constant 0 : i32
    %c0_i32_0 = arith.constant 0 : i32
    %c0_i32_1 = arith.constant 0 : i32
    return %c0_i32, %c0_i32_0 : i32, i32
  }
  func.func @transform_6(%arg0: i32) -> (i32, i32) {
    %c0_i32 = arith.constant 0 : i32
    %c0_i32_0 = arith.constant 0 : i32
    %c0_i32_1 = arith.constant 0 : i32
    return %c0_i32, %c0_i32_0 : i32, i32
  }
  func.func @transform_7(%arg0: i32) -> (i32, i32) {
    %c0_i32 = arith.constant 0 : i32
    %c0_i32_0 = arith.constant 0 : i32
    return %c0_i32, %arg0 : i32, i32
  }
}

</mosaic_0001>

<llo_original>
// kernel: tpu_custom_call.1
$region0: #{tpu_custom_call.1}
  #allocation0 [shape = 'u32[]', space=smem, size = 0x4, offset = 0x4, fixed_abs, tag = 'smem constant byte address 0x4 - core index']
  #allocation1 [shape = 'u32[144,128]{1,0:T(1,128)}', space=vmem, size = 0x12000, scoped, tag = 'internal scratch']
  %s0 = inlined_call_operand.vmem [shape: f32[8,128], index: 0, kind: input, shape index: {}]
  %s1 = inlined_call_operand.vmem [shape: f32[10,8], index: 1, kind: input, shape index: {}]
  %s2 = inlined_call_operand.vmem [shape: f32[10,1], index: 2, kind: input, shape index: {}]
  %s3 = inlined_call_operand.vmem [shape: f32[5,10], index: 3, kind: input, shape index: {}]
  %s4 = inlined_call_operand.vmem [shape: f32[5,1], index: 4, kind: input, shape index: {}]
  %s5 = inlined_call_operand.vmem [shape: f32[2,5], index: 5, kind: input, shape index: {}]
  %s6 = inlined_call_operand.vmem [shape: f32[2,1], index: 6, kind: input, shape index: {}]
  %s7 = inlined_call_operand.hbm [shape: f32[2,128], index: 7, kind: output, shape index: {}]
  %s8 = sld [smem:[#allocation0]]
  $region38: #{tpu_custom_call.1} parent=0
    _
  %s10 = ssub.s32 1, %s8
  %s11 = scalar_select 0, %s10, %s8
  $region1: #{tpu_custom_call.1} parent=0
    #allocation2 [shape = 'u8[1024]{0}', space=vmem, size = 0x400, scoped, tag = 'output window, operand 0, single buffered']
    #allocation3 [shape = 's32[1]{0}', space=sflag, size = 0x4, scoped, tag = 'scoped memory for tpu_custom_call.1']
    %12 = vsyncpa [#allocation3], 0
    // Predicated region
    $region2: #{tpu_custom_call.1} parent=1 // pred_check
      _
    $region3: #{tpu_custom_call.1} parent=1 // pred_check_branch
      %14 = sbr.rel (0) target = $region5
    $region4: #{tpu_custom_call.1} parent=1 // pred_region
      _
    $region5: #{tpu_custom_call.1} parent=1 // pred_fallthru
      _
    // Predicated region
    $region6: #{tpu_custom_call.1} parent=1 // pred_check
      _
    $region7: #{tpu_custom_call.1} parent=1 // pred_check_branch
      %16 = sbr.rel (0) target = $region9
    $region8: #{tpu_custom_call.1} parent=1 // pred_region
      _
    $region9: #{tpu_custom_call.1} parent=1 // pred_fallthru
      _
    // Predicated region
    $region10: #{tpu_custom_call.1} parent=1 // pred_check
      _
    $region11: #{tpu_custom_call.1} parent=1 // pred_check_branch
      %18 = sbr.rel (0) target = $region13
    $region12: #{tpu_custom_call.1} parent=1 // pred_region
      _
    $region13: #{tpu_custom_call.1} parent=1 // pred_fallthru
      _
    // Predicated region
    $region14: #{tpu_custom_call.1} parent=1 // pred_check
      _
    $region15: #{tpu_custom_call.1} parent=1 // pred_check_branch
      %20 = sbr.rel (0) target = $region17
    $region16: #{tpu_custom_call.1} parent=1 // pred_region
      _
    $region17: #{tpu_custom_call.1} parent=1 // pred_fallthru
      _
    // Predicated region
    $region18: #{tpu_custom_call.1} parent=1 // pred_check
      _
    $region19: #{tpu_custom_call.1} parent=1 // pred_check_branch
      %22 = sbr.rel (0) target = $region21
    $region20: #{tpu_custom_call.1} parent=1 // pred_region
      _
    $region21: #{tpu_custom_call.1} parent=1 // pred_fallthru
      _
    // Predicated region
    $region22: #{tpu_custom_call.1} parent=1 // pred_check
      _
    $region23: #{tpu_custom_call.1} parent=1 // pred_check_branch
      %24 = sbr.rel (0) target = $region25
    $region24: #{tpu_custom_call.1} parent=1 // pred_region
      _
    $region25: #{tpu_custom_call.1} parent=1 // pred_fallthru
      _
    // Predicated region
    $region26: #{tpu_custom_call.1} parent=1 // pred_check
      _
    $region27: #{tpu_custom_call.1} parent=1 // pred_check_branch
      %26 = sbr.rel (0) target = $region29
    $region28: #{tpu_custom_call.1} parent=1 // pred_region
      _
    $region29: #{tpu_custom_call.1} parent=1 // pred_fallthru
      _
    %v27 = vld [vmem:[%s0] sm:$0xff]
    %v28 = vld [vmem:[%s1] sm:$0xff]
    %v29 = vld [vmem:[%s1 + $0x8] sm:$0x3]
    %v30 = vld [vmem:[%s2] sm:$0xff]
    %v31 = vld [vmem:[%s2 + $0x8] sm:$0x3]
    %33 = vset.pattern.permute.xlu0 0
    %34 = vperm.xlu0 %33, %v30
    %v35 = vpop.permute.xlu0 %34
    %38 = vset.pattern.permute.xlu0 0
    %39 = vperm.xlu0 %38, %v31
    %v40 = vpop.permute.xlu0 %39
    %vm42 = vcmask 64512
    %v44 = vsel %vm42, %v28, 0
    %v47 = vsel %vm42, %v29, 0
    %49 = vmatprep.subr.mxu0 0.0
    %50 = vmatpush1.msra.mxu0 %v27
    %51 = vmatprep.subr.mxu0 0.0
    %52 = vmatpush1.msra.mxu0 0.0
    %53 = vmatprep.subr.mxu0 0.0
    %54 = vmatpush1.msra.mxu0 0.0
    %55 = vmatprep.subr.mxu0 0.0
    %56 = vmatpush1.msra.mxu0 0.0
    %57 = vmatprep.subr.mxu0 0.0
    %58 = vmatpush1.msra.mxu0 0.0
    %59 = vmatprep.subr.mxu0 0.0
    %60 = vmatpush1.msra.mxu0 0.0
    %61 = vmatprep.subr.mxu0 0.0
    %62 = vmatpush1.msra.mxu0 0.0
    %63 = vmatprep.subr.mxu0 0.0
    %64 = vmatpush1.msra.mxu0 0.0
    %65 = vmatprep.subr.mxu0 0.0
    %66 = vmatpush1.msra.mxu0 0.0
    %67 = vmatprep.subr.mxu0 0.0
    %68 = vmatpush1.msra.mxu0 0.0
    %69 = vmatprep.subr.mxu0 0.0
    %70 = vmatpush1.msra.mxu0 0.0
    %71 = vmatprep.subr.mxu0 0.0
    %72 = vmatpush1.msra.mxu0 0.0
    %73 = vmatprep.subr.mxu0 0.0
    %74 = vmatpush1.msra.mxu0 0.0
    %75 = vmatprep.subr.mxu0 0.0
    %76 = vmatpush1.msra.mxu0 0.0
    %77 = vmatprep.subr.mxu0 0.0
    %78 = vmatpush1.msra.mxu0 0.0
    %79 = vmatprep.subr.mxu0 0.0
    %80 = vmatpush1.msra.mxu0 0.0
    %81 = vmatprep.subr.mxu0 0.0
    %82 = vmatpush1.msra.mxu0 0.0
    %83 = vmatprep.subr.mxu0 0.0
    %84 = vmatpush1.msra.mxu0 0.0
    %85 = vmatprep.subr.mxu0 0.0
    %86 = vmatpush1.msra.mxu0 0.0
    %87 = vmatprep.subr.mxu0 0.0
    %88 = vmatpush1.msra.mxu0 0.0
    %89 = vmatprep.subr.mxu0 0.0
    %90 = vmatpush1.msra.mxu0 0.0
    %91 = vmatprep.subr.mxu0 0.0
    %92 = vmatpush1.msra.mxu0 0.0
    %93 = vmatprep.subr.mxu0 0.0
    %94 = vmatpush1.msra.mxu0 0.0
    %95 = vmatprep.subr.mxu0 0.0
    %96 = vmatpush1.msra.mxu0 0.0
    %97 = vmatprep.subr.mxu0 0.0
    %98 = vmatpush1.msra.mxu0 0.0
    %99 = vmatprep.subr.mxu0 0.0
    %100 = vmatpush1.msra.mxu0 0.0
    %101 = vmatprep.subr.mxu0 0.0
    %102 = vmatpush1.msra.mxu0 0.0
    %103 = vmatprep.subr.mxu0 0.0
    %104 = vmatpush1.msra.mxu0 0.0
    %105 = vmatprep.subr.mxu0 0.0
    %106 = vmatpush1.msra.mxu0 0.0
    %107 = vmatprep.subr.mxu0 0.0
    %108 = vmatpush1.msra.mxu0 0.0
    %109 = vmatprep.subr.mxu0 0.0
    %110 = vmatpush1.msra.mxu0 0.0
    %111 = vmatprep.subr.mxu0 0.0
    %112 = vmatpush1.msra.mxu0 0.0
    %113 = vmatprep.mubr.f32.mxu0 0.0
    %114 = vmatmul.mubr.f32.gmra.mrb[0].mxu0 %v44
    %v115 = vpop.f32.mrb[0].mxu0
    %v116 = vadd.f32 %v35, %v115
    %v117 = vpop.f32.mrb[0].mxu0
    %118 = vmatprep.mubr.f32.mxu0 0.0
    %119 = vmatmul.mubr.f32.gmra.mrb[0].mxu0 %v47
    %v120 = vpop.f32.mrb[0].mxu0
    %v121 = vadd.f32 %v40, %v120
    %v122 = vpop.f32.mrb[0].mxu0
    %123 = vdwg.mxu0
    %v124 = vmax.f32 %v116, 0.0
    %v125 = vmax.f32 %v121, 0.0
    %v126 = vld [vmem:[%s3] sm:$0x1f]
    %v127 = vld [vmem:[%s4] sm:$0x1f]
    %129 = vset.pattern.permute.xlu0 0
    %130 = vperm.xlu0 %129, %v127
    %v131 = vpop.permute.xlu0 %130
    %vm133 = vcmask 80896
    %v135 = vsel %vm133, %v126, 0
    %vm137 = vcmask 1041408
    %v139 = vsel %vm137, %v125, 0
    %141 = vmatprep.subr.mxu0 0.0
    %142 = vmatpush1.msra.mxu0 %v124
    %143 = vmatprep.subr.mxu0 0.0
    %144 = vmatpush1.msra.mxu0 %v139
    %145 = vmatprep.subr.mxu0 0.0
    %146 = vmatpush1.msra.mxu0 0.0
    %147 = vmatprep.subr.mxu0 0.0
    %148 = vmatpush1.msra.mxu0 0.0
    %149 = vmatprep.subr.mxu0 0.0
    %150 = vmatpush1.msra.mxu0 0.0
    %151 = vmatprep.subr.mxu0 0.0
    %152 = vmatpush1.msra.mxu0 0.0
    %153 = vmatprep.subr.mxu0 0.0
    %154 = vmatpush1.msra.mxu0 0.0
    %155 = vmatprep.subr.mxu0 0.0
    %156 = vmatpush1.msra.mxu0 0.0
    %157 = vmatprep.subr.mxu0 0.0
    %158 = vmatpush1.msra.mxu0 0.0
    %159 = vmatprep.subr.mxu0 0.0
    %160 = vmatpush1.msra.mxu0 0.0
    %161 = vmatprep.subr.mxu0 0.0
    %162 = vmatpush1.msra.mxu0 0.0
    %163 = vmatprep.subr.mxu0 0.0
    %164 = vmatpush1.msra.mxu0 0.0
    %165 = vmatprep.subr.mxu0 0.0
    %166 = vmatpush1.msra.mxu0 0.0
    %167 = vmatprep.subr.mxu0 0.0
    %168 = vmatpush1.msra.mxu0 0.0
    %169 = vmatprep.subr.mxu0 0.0
    %170 = vmatpush1.msra.mxu0 0.0
    %171 = vmatprep.subr.mxu0 0.0
    %172 = vmatpush1.msra.mxu0 0.0
    %173 = vmatprep.subr.mxu0 0.0
    %174 = vmatpush1.msra.mxu0 0.0
    %175 = vmatprep.subr.mxu0 0.0
    %176 = vmatpush1.msra.mxu0 0.0
    %177 = vmatprep.subr.mxu0 0.0
    %178 = vmatpush1.msra.mxu0 0.0
    %179 = vmatprep.subr.mxu0 0.0
    %180 = vmatpush1.msra.mxu0 0.0
    %181 = vmatprep.subr.mxu0 0.0
    %182 = vmatpush1.msra.mxu0 0.0
    %183 = vmatprep.subr.mxu0 0.0
    %184 = vmatpush1.msra.mxu0 0.0
    %185 = vmatprep.subr.mxu0 0.0
    %186 = vmatpush1.msra.mxu0 0.0
    %187 = vmatprep.subr.mxu0 0.0
    %188 = vmatpush1.msra.mxu0 0.0
    %189 = vmatprep.subr.mxu0 0.0
    %190 = vmatpush1.msra.mxu0 0.0
    %191 = vmatprep.subr.mxu0 0.0
    %192 = vmatpush1.msra.mxu0 0.0
    %193 = vmatprep.subr.mxu0 0.0
    %194 = vmatpush1.msra.mxu0 0.0
    %195 = vmatprep.subr.mxu0 0.0
    %196 = vmatpush1.msra.mxu0 0.0
    %197 = vmatprep.subr.mxu0 0.0
    %198 = vmatpush1.msra.mxu0 0.0
    %199 = vmatprep.subr.mxu0 0.0
    %200 = vmatpush1.msra.mxu0 0.0
    %201 = vmatprep.subr.mxu0 0.0
    %202 = vmatpush1.msra.mxu0 0.0
    %203 = vmatprep.subr.mxu0 0.0
    %204 = vmatpush1.msra.mxu0 0.0
    %205 = vmatprep.mubr.f32.mxu0 0.0
    %206 = vmatmul.mubr.f32.gmra.mrb[0].mxu0 %v135
    %v207 = vpop.f32.mrb[0].mxu0
    %v208 = vadd.f32 %v131, %v207
    %v209 = vpop.f32.mrb[0].mxu0
    %210 = vdwg.mxu0
    %v211 = vmax.f32 %v208, 0.0
    %v212 = vld [vmem:[%s5] sm:$0x3]
    %v213 = vld [vmem:[%s6] sm:$0x3]
    %215 = vset.pattern.permute.xlu0 0
    %216 = vperm.xlu0 %215, %v213
    %v217 = vpop.permute.xlu0 %216
    %vm219 = vcmask 39936
    %v221 = vsel %vm219, %v212, 0
    %vm223 = vcmask 1044480
    %v225 = vsel %vm223, %v211, 0
    %227 = vmatprep.subr.mxu0 0.0
    %228 = vmatpush1.msra.mxu0 %v225
    %229 = vmatprep.subr.mxu0 0.0
    %230 = vmatpush1.msra.mxu0 0.0
    %231 = vmatprep.subr.mxu0 0.0
    %232 = vmatpush1.msra.mxu0 0.0
    %233 = vmatprep.subr.mxu0 0.0
    %234 = vmatpush1.msra.mxu0 0.0
    %235 = vmatprep.subr.mxu0 0.0
    %236 = vmatpush1.msra.mxu0 0.0
    %237 = vmatprep.subr.mxu0 0.0
    %238 = vmatpush1.msra.mxu0 0.0
    %239 = vmatprep.subr.mxu0 0.0
    %240 = vmatpush1.msra.mxu0 0.0
    %241 = vmatprep.subr.mxu0 0.0
    %242 = vmatpush1.msra.mxu0 0.0
    %243 = vmatprep.subr.mxu0 0.0
    %244 = vmatpush1.msra.mxu0 0.0
    %245 = vmatprep.subr.mxu0 0.0
    %246 = vmatpush1.msra.mxu0 0.0
    %247 = vmatprep.subr.mxu0 0.0
    %248 = vmatpush1.msra.mxu0 0.0
    %249 = vmatprep.subr.mxu0 0.0
    %250 = vmatpush1.msra.mxu0 0.0
    %251 = vmatprep.subr.mxu0 0.0
    %252 = vmatpush1.msra.mxu0 0.0
    %253 = vmatprep.subr.mxu0 0.0
    %254 = vmatpush1.msra.mxu0 0.0
    %255 = vmatprep.subr.mxu0 0.0
    %256 = vmatpush1.msra.mxu0 0.0
    %257 = vmatprep.subr.mxu0 0.0
    %258 = vmatpush1.msra.mxu0 0.0
    %259 = vmatprep.subr.mxu0 0.0
    %260 = vmatpush1.msra.mxu0 0.0
    %261 = vmatprep.subr.mxu0 0.0
    %262 = vmatpush1.msra.mxu0 0.0
    %263 = vmatprep.subr.mxu0 0.0
    %264 = vmatpush1.msra.mxu0 0.0
    %265 = vmatprep.subr.mxu0 0.0
    %266 = vmatpush1.msra.mxu0 0.0
    %267 = vmatprep.subr.mxu0 0.0
    %268 = vmatpush1.msra.mxu0 0.0
    %269 = vmatprep.subr.mxu0 0.0
    %270 = vmatpush1.msra.mxu0 0.0
    %271 = vmatprep.subr.mxu0 0.0
    %272 = vmatpush1.msra.mxu0 0.0
    %273 = vmatprep.subr.mxu0 0.0
    %274 = vmatpush1.msra.mxu0 0.0
    %275 = vmatprep.subr.mxu0 0.0
    %276 = vmatpush1.msra.mxu0 0.0
    %277 = vmatprep.subr.mxu0 0.0
    %278 = vmatpush1.msra.mxu0 0.0
    %279 = vmatprep.subr.mxu0 0.0
    %280 = vmatpush1.msra.mxu0 0.0
    %281 = vmatprep.subr.mxu0 0.0
    %282 = vmatpush1.msra.mxu0 0.0
    %283 = vmatprep.subr.mxu0 0.0
    %284 = vmatpush1.msra.mxu0 0.0
    %285 = vmatprep.subr.mxu0 0.0
    %286 = vmatpush1.msra.mxu0 0.0
    %287 = vmatprep.subr.mxu0 0.0
    %288 = vmatpush1.msra.mxu0 0.0
    %289 = vmatprep.subr.mxu0 0.0
    %290 = vmatpush1.msra.mxu0 0.0
    %291 = vmatprep.mubr.f32.mxu0 0.0
    %292 = vmatmul.mubr.f32.gmra.mrb[0].mxu0 %v221
    %v293 = vpop.f32.mrb[0].mxu0
    %v294 = vadd.f32 %v217, %v293
    %v295 = vpop.f32.mrb[0].mxu0
    %296 = vdwg.mxu0
    %v297 = vmax.f32 %v294, 0.0
    %v298 = vsel %vm137, %v297, -inf
    %v299 = vrot.slane %v298, 4
    %v300 = vmax.f32 %v298, %v299
    %v301 = vrot.slane %v300, 2
    %v302 = vmax.f32 %v300, %v301
    %v303 = vrot.slane %v302, 1
    %v304 = vmax.f32 %v302, %v303
    %v305 = vsub.f32 %v297, %v304
    %v306 = vmul.f32 %v305, 1.442695
    %v307 = vpow.pop %v306
    %v308 = vsel %vm137, %v307, 0.0
    %v309 = vrot.slane %v308, 4
    %v310 = vadd.f32 %v308, %v309
    %v311 = vrot.slane %v310, 2
    %v312 = vadd.f32 %v310, %v311
    %v313 = vrot.slane %v312, 1
    %v314 = vadd.f32 %v312, %v313
    %v315 = vlog2.pop %v314
    %v316 = vmul.f32 %v315, 0.6931472
    %v317 = vsub.f32 %v305, %v316
    %318 = vst [vmem:[#allocation2] sm:$0x3] %v317
    // Predicated region
    $region30: #{tpu_custom_call.1} parent=1 // pred_check
      _
    $region31: #{tpu_custom_call.1} parent=1 // pred_check_branch
      %320 = sbr.rel (0) target = $region33
    $region32: #{tpu_custom_call.1} parent=1 // pred_region
      %s322 = ssub.s32 32, 32
      %323 = vsyncadd [#allocation3], %s322
      %s325 = sshll.u32 [#allocation2], 4
      %s326 = int_to_ptr.vmem [resolvable:$true] %s325
      %328 = dma.vmem_to_hbm [thread:$0]  %s326, 32, %s7, [#allocation3]
    $region33: #{tpu_custom_call.1} parent=1 // pred_fallthru
      _
    // Predicated region
    $region34: #{tpu_custom_call.1} parent=1 // pred_check
      _
    $region35: #{tpu_custom_call.1} parent=1 // pred_check_branch
      %330 = sbr.rel (0) target = $region37
    $region36: #{tpu_custom_call.1} parent=1 // pred_region
      %331 = dma.done [#allocation3], 32
    $region37: #{tpu_custom_call.1} parent=1 // pred_fallthru
      _
    %332 = vsyncpa [#allocation3], 1

</llo_original>
